<compile_context>
chip_gen: v5e
topology: v5e:2x2
jax: 0.10.0
libtpu: 0.0.40
codegen_flags: <defaults>
</compile_context>

<pallas_src>
import functools
import math

import jax
import jax.numpy as jnp
from jax import lax
from jax.experimental import pallas as pl
from jax.experimental.pallas import tpu as pltpu

LN_EPS = 1e-5  # torch.nn.LayerNorm default


def _round_up(n, m):
    return (n + m - 1) // m * m


def _layernorm(v, gamma, beta, h_valid, hp):
    """LayerNorm over the last axis, exact over the first `h_valid` lanes.
    Padded lanes of v, gamma and beta must be zero (guaranteed by prepare_params
    and by the zero-padded weight columns for intermediate activations)."""
    inv_n = 1.0 / float(h_valid)
    mu = jnp.sum(v, axis=-1, keepdims=True) * inv_n          # pads contribute 0
    centered = v - mu
    ssq = jnp.sum(centered * centered, axis=-1, keepdims=True)
    if hp != h_valid:
        # pad lanes contribute (hp - h_valid) * mu^2 to ssq; remove analytically
        # (cheaper than a TBxHp jnp.where select on the VPU slot).
        ssq = ssq - float(hp - h_valid) * (mu * mu)
    var = ssq * inv_n
    # gamma/beta are zero on pad lanes -> output stays zero there.
    return centered * lax.rsqrt(var + LN_EPS) * gamma + beta


def residual_block_kernel(x_ref, p_ref, w1t_ref, w2t_ref, o_ref, *, h_valid):
    hp = x_ref.shape[-1]
    x = x_ref[...].astype(jnp.float32)
    # packed params: rows 0..5 = g1, be1, b1, g2, be2, b2 (rows 6,7 unused)
    g1, be1, b1 = p_ref[0:1, :], p_ref[1:2, :], p_ref[2:3, :]
    g2, be2, b2 = p_ref[3:4, :], p_ref[4:5, :], p_ref[5:6, :]
    mm_dtype = w1t_ref.dtype

    # branch 1: fc1(act1(norm1(x)))  -- LN/bias in f32, matmul in mm_dtype
    h = _layernorm(x, g1, be1, h_valid, hp)
    h = jnp.maximum(h, 0.0).astype(mm_dtype)
    h = jnp.dot(h, w1t_ref[...], preferred_element_type=jnp.float32) + b1

    # branch 2: fc2(act2(norm2(x1)))
    h2 = _layernorm(h, g2, be2, h_valid, hp)
    h2 = jnp.maximum(h2, 0.0).astype(mm_dtype)
    h2 = jnp.dot(h2, w2t_ref[...], preferred_element_type=jnp.float32) + b2

    # residual add
    o_ref[...] = (x + h2).astype(o_ref.dtype)


def prepare_params(params, *, matmul_dtype=jnp.bfloat16):
    """One-time parameter prep: pad H to a lane-dense multiple of 128,
    pre-transpose the PyTorch (out,in) Linear weights to (in,out) in
    `matmul_dtype`, and pack the six LN/bias vectors into one (8, Hp) f32 slab."""
    H = params["fc1_w"].shape[0]
    Hp = _round_up(max(H, 128), 128)
    padv = lambda v: jnp.pad(v.astype(jnp.float32), (0, Hp - H))
    padw = lambda w: jnp.pad(w.astype(jnp.float32).T,
                             ((0, Hp - H), (0, Hp - H))).astype(matmul_dtype)
    packed = jnp.stack([
        padv(params["ln1_w"]), padv(params["ln1_b"]), padv(params["fc1_b"]),
        padv(params["ln2_w"]), padv(params["ln2_b"]), padv(params["fc2_b"]),
        jnp.zeros((Hp,), jnp.float32), jnp.zeros((Hp,), jnp.float32)])
    return {"h": H, "hp": Hp, "params": packed,
            "w1t": padw(params["fc1_w"]), "w2t": padw(params["fc2_w"])}


def _vmem_capacity_bytes():
    try:
        return int(pltpu.get_tpu_info().vmem_capacity_bytes)
    except Exception:
        return 64 << 20          # conservative fallback (v7x per-TensorCore)


def residual_block(x, prep, *, block_rows=None):
    """x: (B, H) float32 or bfloat16.  prep: output of prepare_params (reuse)."""
    B, H = x.shape
    assert H == prep["h"], "prepare_params hidden_dim mismatch"
    Hp = prep["hp"]
    # Lane pad only when H is not 128-aligned; batch axis is never padded.
    x_in = x if Hp == H else jnp.pad(x, ((0, 0), (0, Hp - H)))

    phys_vmem = _vmem_capacity_bytes()
    vmem_cap = phys_vmem * 3 // 4          # leave room for Mosaic internal scratch
    wbytes = jnp.dtype(prep["w1t"].dtype).itemsize
    xbytes = jnp.dtype(x.dtype).itemsize

    # Batch tile: 512 rows on 128-MiB parts (v5e/v6e), 256 on 64-MiB parts (v7x).
    if block_rows is None:
        block_rows = 512 if phys_vmem >= (96 << 20) else 256
    TB = B if B <= block_rows else block_rows
    # Guarantee >=2 grid steps for moderate batches so both v7x TensorCores get
    # work under dimension_semantics=("parallel",). Harmless on v5e/v6e.
    if B <= block_rows and B >= 256:
        TB = _round_up(pl.cdiv(B, 2), 128)

    def vmem_need(tb, wbufs):
        return (wbufs * (2 * Hp * Hp * wbytes + 8 * Hp * 4)   # resident weights + params
                + 2 * 2 * tb * Hp * xbytes                    # x/o tiles, double-buffered
                + 8 * tb * Hp * 4)                            # live f32 intermediates
    while TB > 8 and vmem_need(TB, 1) > vmem_cap:
        TB = max(_round_up(TB // 2, 8), 8)
    # TODO(synk): if the two resident weights alone approach vmem_cap (Hp >~ 2048
    # bf16 on v7x), add an N-tiling grid axis over weight columns (two-phase:
    # fc1 accumulate, then fc2 column-tiled) instead of shrinking TB further.

    vmem_limit = int(min(max(vmem_need(TB, 2) + (2 << 20), 32 << 20), vmem_cap))
    grid = (pl.cdiv(B, TB),)

    cost = pl.CostEstimate(
        flops=4 * B * Hp * Hp + 12 * B * Hp,
        transcendentals=2 * B,
        bytes_accessed=2 * B * Hp * xbytes + 2 * Hp * Hp * wbytes + 8 * Hp * 4)

    def build(use_buffered):
        resident = {"pipeline_mode": pl.Buffered(1)} if use_buffered else {}
        tile = pl.BlockSpec((TB, Hp), lambda i: (i, 0))
        pvec = pl.BlockSpec((8, Hp), lambda i: (0, 0), **resident)
        mat = pl.BlockSpec((Hp, Hp), lambda i: (0, 0), **resident)
        return pl.pallas_call(
            functools.partial(residual_block_kernel, h_valid=H),
            out_shape=jax.ShapeDtypeStruct((B, Hp), x.dtype),
            grid=grid,
            in_specs=[tile, pvec, mat, mat],
            out_specs=tile,
            compiler_params=pltpu.CompilerParams(
                dimension_semantics=("parallel",),
                vmem_limit_bytes=vmem_limit),
            cost_estimate=cost,
        )

    args = (x_in, prep["params"], prep["w1t"], prep["w2t"])
    try:
        out = build(use_buffered=True)(*args)
    except Exception:
        # Single-buffering resident blocks is a perf-only knob; fall back to the
        # default double-buffered pipeline if this jax rejects Buffered(1).
        out = build(use_buffered=False)(*args)
    return out if Hp == H else out[:, :H]


# ---------------- init + pure-JAX reference (match PyTorch module) ----------------
def orthogonal_init(key, shape, gain):
    """Mimics torch.nn.init.orthogonal_ for a 2D weight."""
    rows, cols = shape
    a = jax.random.normal(key, (max(rows, cols), min(rows, cols)), jnp.float32)
    q, r = jnp.linalg.qr(a)
    q = q * jnp.sign(jnp.diag(r))[None, :]
    if rows < cols:
        q = q.T
    return gain * q[:rows, :cols]


def make_params(key, hidden_dim):
    k1, k2 = jax.random.split(key)
    gain = math.sqrt(2.0)
    return {
        "ln1_w": jnp.ones((hidden_dim,), jnp.float32),
        "ln1_b": jnp.zeros((hidden_dim,), jnp.float32),
        "fc1_w": orthogonal_init(k1, (hidden_dim, hidden_dim), gain),  # (out, in)
        "fc1_b": jnp.zeros((hidden_dim,), jnp.float32),
        "ln2_w": jnp.ones((hidden_dim,), jnp.float32),
        "ln2_b": jnp.zeros((hidden_dim,), jnp.float32),
        "fc2_w": orthogonal_init(k2, (hidden_dim, hidden_dim), gain),
        "fc2_b": jnp.zeros((hidden_dim,), jnp.float32),
    }


def residual_block_ref(x, p):
    """Pure-JAX reference matching the PyTorch forward."""
    def ln(v, g, b):
        mu = v.mean(-1, keepdims=True)
        var = ((v - mu) ** 2).mean(-1, keepdims=True)
        return (v - mu) / jnp.sqrt(var + LN_EPS) * g + b
    h = jnp.maximum(ln(x, p["ln1_w"], p["ln1_b"]), 0.0) @ p["fc1_w"].T + p["fc1_b"]
    h2 = jnp.maximum(ln(h, p["ln2_w"], p["ln2_b"]), 0.0) @ p["fc2_w"].T + p["fc2_b"]
    return x + h2


if __name__ == "__main__":
    key = jax.random.PRNGKey(0)
    kx, kx2, kp = jax.random.split(key, 3)
    B, H = 8, 32
    x = jax.random.normal(kx, (B, H), jnp.float32)
    params = make_params(kp, H)
    ref = residual_block_ref(x, params)

    # f32 matmul path: tight-tolerance correctness check.
    prep_f32 = prepare_params(params, matmul_dtype=jnp.float32)
    out_f32 = jax.block_until_ready(residual_block(x, prep_f32))
    assert out_f32.shape == (B, H) and out_f32.dtype == jnp.float32
    assert jnp.allclose(out_f32, ref, atol=1e-4, rtol=1e-4), \
        f"f32 max abs err {jnp.max(jnp.abs(out_f32 - ref))}"

    # Partial final batch block (B=20, TB=8 -> grid of 3, last block 4 valid rows):
    # exercises the removed batch padding / pl.cdiv boundary handling.
    B2 = 20
    x2 = jax.random.normal(kx2, (B2, H), jnp.float32)
    ref2 = residual_block_ref(x2, params)
    out2 = jax.block_until_ready(residual_block(x2, prep_f32, block_rows=8))
    assert out2.shape == (B2, H)
    assert jnp.allclose(out2, ref2, atol=1e-4, rtol=1e-4), \
        f"partial-block max abs err {jnp.max(jnp.abs(out2 - ref2))}"

    # bf16 matmul path (default; targets v6e/v7x MXU): looser tolerance.
    prep_bf16 = prepare_params(params)   # matmul_dtype=bf16
    out_bf16 = jax.block_until_ready(residual_block(x, prep_bf16))
    assert out_bf16.shape == (B, H) and out_bf16.dtype == jnp.float32
    assert jnp.allclose(out_bf16, ref, atol=1e-1, rtol=5e-2), \
        f"bf16 max abs err {jnp.max(jnp.abs(out_bf16 - ref))}"

    print("KERNEL_OK")
</pallas_src>

<mosaic_0001>
module attributes {stable_mosaic.version = 11 : i64} {
  func.func @residual_block_kernel(%arg0: i32, %arg1: memref<8x128xf32, #tpu.memory_space<vmem>>, %arg2: memref<8x128xf32, #tpu.memory_space<vmem>>, %arg3: memref<128x128xf32, #tpu.memory_space<vmem>>, %arg4: memref<128x128xf32, #tpu.memory_space<vmem>>, %arg5: memref<8x128xf32, #tpu.memory_space<vmem>>) attributes {dimension_semantics = [#tpu.dimension_semantics<parallel>], iteration_bounds = array<i64: 1>, scalar_prefetch = 0 : i64, scratch_operands = 0 : i64, tpu.core_type = #tpu.core_type<tc>, window_params = [{transform_indices = @transform_0, window_bounds = array<i64: 8, 128>}, {pipeline_mode = #tpu.pipeline_mode<synchronous>, transform_indices = @transform_1, window_bounds = array<i64: 8, 128>}, {pipeline_mode = #tpu.pipeline_mode<synchronous>, transform_indices = @transform_2, window_bounds = array<i64: 128, 128>}, {pipeline_mode = #tpu.pipeline_mode<synchronous>, transform_indices = @transform_3, window_bounds = array<i64: 128, 128>}, {transform_indices = @transform_4, window_bounds = array<i64: 8, 128>}]} {
    %c0 = arith.constant 0 : index
    %c0_0 = arith.constant 0 : index
    %0 = vector.load %arg1[%c0, %c0_0] : memref<8x128xf32, #tpu.memory_space<vmem>>, vector<8x128xf32>
    %c0_1 = arith.constant 0 : index
    %c0_2 = arith.constant 0 : index
    %1 = vector.load %arg2[%c0_1, %c0_2] : memref<8x128xf32, #tpu.memory_space<vmem>>, vector<1x128xf32>
    %c1 = arith.constant 1 : index
    %c0_3 = arith.constant 0 : index
    %2 = vector.load %arg2[%c1, %c0_3] : memref<8x128xf32, #tpu.memory_space<vmem>>, vector<1x128xf32>
    %c2 = arith.constant 2 : index
    %c0_4 = arith.constant 0 : index
    %3 = vector.load %arg2[%c2, %c0_4] : memref<8x128xf32, #tpu.memory_space<vmem>>, vector<1x128xf32>
    %c3 = arith.constant 3 : index
    %c0_5 = arith.constant 0 : index
    %4 = vector.load %arg2[%c3, %c0_5] : memref<8x128xf32, #tpu.memory_space<vmem>>, vector<1x128xf32>
    %c4 = arith.constant 4 : index
    %c0_6 = arith.constant 0 : index
    %5 = vector.load %arg2[%c4, %c0_6] : memref<8x128xf32, #tpu.memory_space<vmem>>, vector<1x128xf32>
    %c5 = arith.constant 5 : index
    %c0_7 = arith.constant 0 : index
    %6 = vector.load %arg2[%c5, %c0_7] : memref<8x128xf32, #tpu.memory_space<vmem>>, vector<1x128xf32>
    %cst = arith.constant dense<0.000000e+00> : vector<8xf32>
    %7 = vector.multi_reduction <add>, %0, %cst [1] : vector<8x128xf32> to vector<8xf32>
    %8 = vector.shape_cast %7 : vector<8xf32> to vector<8x1xf32>
    %cst_8 = arith.constant 3.125000e-02 : f32
    %9 = vector.broadcast %cst_8 : f32 to vector<8x1xf32>
    %10 = arith.mulf %8, %9 : vector<8x1xf32>
    %11 = vector.broadcast %10 : vector<8x1xf32> to vector<8x128xf32>
    %12 = arith.subf %0, %11 : vector<8x128xf32>
    %13 = arith.mulf %12, %12 : vector<8x128xf32>
    %cst_9 = arith.constant dense<0.000000e+00> : vector<8xf32>
    %14 = vector.multi_reduction <add>, %13, %cst_9 [1] : vector<8x128xf32> to vector<8xf32>
    %15 = vector.shape_cast %14 : vector<8xf32> to vector<8x1xf32>
    %16 = arith.mulf %10, %10 : vector<8x1xf32>
    %cst_10 = arith.constant 9.600000e+01 : f32
    %17 = vector.broadcast %cst_10 : f32 to vector<8x1xf32>
    %18 = arith.mulf %17, %16 : vector<8x1xf32>
    %19 = arith.subf %15, %18 : vector<8x1xf32>
    %cst_11 = arith.constant 3.125000e-02 : f32
    %20 = vector.broadcast %cst_11 : f32 to vector<8x1xf32>
    %21 = arith.mulf %19, %20 : vector<8x1xf32>
    %cst_12 = arith.constant 9.99999974E-6 : f32
    %22 = vector.broadcast %cst_12 : f32 to vector<8x1xf32>
    %23 = arith.addf %21, %22 : vector<8x1xf32>
    %24 = math.rsqrt %23 : vector<8x1xf32>
    %25 = vector.broadcast %24 : vector<8x1xf32> to vector<8x128xf32>
    %26 = arith.mulf %12, %25 : vector<8x128xf32>
    %27 = vector.broadcast %1 : vector<1x128xf32> to vector<8x128xf32>
    %28 = arith.mulf %26, %27 : vector<8x128xf32>
    %29 = vector.broadcast %2 : vector<1x128xf32> to vector<8x128xf32>
    %30 = arith.addf %28, %29 : vector<8x128xf32>
    %cst_13 = arith.constant 0.000000e+00 : f32
    %31 = vector.broadcast %cst_13 : f32 to vector<8x128xf32>
    %32 = arith.maximumf %30, %31 : vector<8x128xf32>
    %c0_14 = arith.constant 0 : index
    %c0_15 = arith.constant 0 : index
    %33 = vector.load %arg3[%c0_14, %c0_15] : memref<128x128xf32, #tpu.memory_space<vmem>>, vector<128x128xf32>
    %cst_16 = arith.constant dense<0.000000e+00> : vector<8x128xf32>
    %34 = tpu.matmul %32, %33, %cst_16 {dimension_numbers = #tpu.dot_dimension_numbers<[1], [0], [0], [1], [0, 0, 1, 1], [], []>} : vector<8x128xf32>, vector<128x128xf32>, vector<8x128xf32> -> vector<8x128xf32>
    %35 = vector.broadcast %3 : vector<1x128xf32> to vector<8x128xf32>
    %36 = arith.addf %34, %35 : vector<8x128xf32>
    %cst_17 = arith.constant dense<0.000000e+00> : vector<8xf32>
    %37 = vector.multi_reduction <add>, %36, %cst_17 [1] : vector<8x128xf32> to vector<8xf32>
    %38 = vector.shape_cast %37 : vector<8xf32> to vector<8x1xf32>
    %cst_18 = arith.constant 3.125000e-02 : f32
    %39 = vector.broadcast %cst_18 : f32 to vector<8x1xf32>
    %40 = arith.mulf %38, %39 : vector<8x1xf32>
    %41 = vector.broadcast %40 : vector<8x1xf32> to vector<8x128xf32>
    %42 = arith.subf %36, %41 : vector<8x128xf32>
    %43 = arith.mulf %42, %42 : vector<8x128xf32>
    %cst_19 = arith.constant dense<0.000000e+00> : vector<8xf32>
    %44 = vector.multi_reduction <add>, %43, %cst_19 [1] : vector<8x128xf32> to vector<8xf32>
    %45 = vector.shape_cast %44 : vector<8xf32> to vector<8x1xf32>
    %46 = arith.mulf %40, %40 : vector<8x1xf32>
    %cst_20 = arith.constant 9.600000e+01 : f32
    %47 = vector.broadcast %cst_20 : f32 to vector<8x1xf32>
    %48 = arith.mulf %47, %46 : vector<8x1xf32>
    %49 = arith.subf %45, %48 : vector<8x1xf32>
    %cst_21 = arith.constant 3.125000e-02 : f32
    %50 = vector.broadcast %cst_21 : f32 to vector<8x1xf32>
    %51 = arith.mulf %49, %50 : vector<8x1xf32>
    %cst_22 = arith.constant 9.99999974E-6 : f32
    %52 = vector.broadcast %cst_22 : f32 to vector<8x1xf32>
    %53 = arith.addf %51, %52 : vector<8x1xf32>
    %54 = math.rsqrt %53 : vector<8x1xf32>
    %55 = vector.broadcast %54 : vector<8x1xf32> to vector<8x128xf32>
    %56 = arith.mulf %42, %55 : vector<8x128xf32>
    %57 = vector.broadcast %4 : vector<1x128xf32> to vector<8x128xf32>
    %58 = arith.mulf %56, %57 : vector<8x128xf32>
    %59 = vector.broadcast %5 : vector<1x128xf32> to vector<8x128xf32>
    %60 = arith.addf %58, %59 : vector<8x128xf32>
    %cst_23 = arith.constant 0.000000e+00 : f32
    %61 = vector.broadcast %cst_23 : f32 to vector<8x128xf32>
    %62 = arith.maximumf %60, %61 : vector<8x128xf32>
    %c0_24 = arith.constant 0 : index
    %c0_25 = arith.constant 0 : index
    %63 = vector.load %arg4[%c0_24, %c0_25] : memref<128x128xf32, #tpu.memory_space<vmem>>, vector<128x128xf32>
    %cst_26 = arith.constant dense<0.000000e+00> : vector<8x128xf32>
    %64 = tpu.matmul %62, %63, %cst_26 {dimension_numbers = #tpu.dot_dimension_numbers<[1], [0], [0], [1], [0, 0, 1, 1], [], []>} : vector<8x128xf32>, vector<128x128xf32>, vector<8x128xf32> -> vector<8x128xf32>
    %65 = vector.broadcast %6 : vector<1x128xf32> to vector<8x128xf32>
    %66 = arith.addf %64, %65 : vector<8x128xf32>
    %67 = arith.addf %0, %66 : vector<8x128xf32>
    %c0_27 = arith.constant 0 : index
    %c0_28 = arith.constant 0 : index
    %68 = vector.load %arg5[%c0_27, %c0_28] : memref<8x128xf32, #tpu.memory_space<vmem>>, vector<8x128xf32>
    tpu.vector_store %arg5[%c0_27, %c0_28], %67 {strides = array<i32>} : memref<8x128xf32, #tpu.memory_space<vmem>>, vector<8x128xf32>,
    return
  }
  func.func @transform_0(%arg0: i32) -> (i32, i32) {
    %c0_i32 = arith.constant 0 : i32
    %c0_i32_0 = arith.constant 0 : i32
    return %arg0, %c0_i32 : i32, i32
  }
  func.func @transform_1(%arg0: i32) -> (i32, i32) {
    %c0_i32 = arith.constant 0 : i32
    %c0_i32_0 = arith.constant 0 : i32
    %c0_i32_1 = arith.constant 0 : i32
    return %c0_i32, %c0_i32_0 : i32, i32
  }
  func.func @transform_2(%arg0: i32) -> (i32, i32) {
    %c0_i32 = arith.constant 0 : i32
    %c0_i32_0 = arith.constant 0 : i32
    %c0_i32_1 = arith.constant 0 : i32
    return %c0_i32, %c0_i32_0 : i32, i32
  }
  func.func @transform_3(%arg0: i32) -> (i32, i32) {
    %c0_i32 = arith.constant 0 : i32
    %c0_i32_0 = arith.constant 0 : i32
    %c0_i32_1 = arith.constant 0 : i32
    return %c0_i32, %c0_i32_0 : i32, i32
  }
  func.func @transform_4(%arg0: i32) -> (i32, i32) {
    %c0_i32 = arith.constant 0 : i32
    %c0_i32_0 = arith.constant 0 : i32
    return %arg0, %c0_i32 : i32, i32
  }
}

module attributes {stable_mosaic.version = 11 : i64} {
  func.func @residual_block_kernel(%arg0: i32, %arg1: memref<8x128xf32, #tpu.memory_space<vmem>>, %arg2: memref<8x128xf32, #tpu.memory_space<vmem>>, %arg3: memref<128x128xf32, #tpu.memory_space<vmem>>, %arg4: memref<128x128xf32, #tpu.memory_space<vmem>>, %arg5: memref<8x128xf32, #tpu.memory_space<vmem>>) attributes {dimension_semantics = [#tpu.dimension_semantics<parallel>], iteration_bounds = array<i64: 1>, scalar_prefetch = 0 : i64, scratch_operands = 0 : i64, tpu.core_type = #tpu.core_type<tc>, window_params = [{transform_indices = @transform_0, window_bounds = array<i64: 8, 128>}, {pipeline_mode = #tpu.pipeline_mode<synchronous>, transform_indices = @transform_1, window_bounds = array<i64: 8, 128>}, {pipeline_mode = #tpu.pipeline_mode<synchronous>, transform_indices = @transform_2, window_bounds = array<i64: 128, 128>}, {pipeline_mode = #tpu.pipeline_mode<synchronous>, transform_indices = @transform_3, window_bounds = array<i64: 128, 128>}, {transform_indices = @transform_4, window_bounds = array<i64: 8, 128>}]} {
    %c0 = arith.constant 0 : index
    %c0_0 = arith.constant 0 : index
    %0 = vector.load %arg1[%c0, %c0_0] : memref<8x128xf32, #tpu.memory_space<vmem>>, vector<8x128xf32>
    %c0_1 = arith.constant 0 : index
    %c0_2 = arith.constant 0 : index
    %1 = vector.load %arg2[%c0_1, %c0_2] : memref<8x128xf32, #tpu.memory_space<vmem>>, vector<1x128xf32>
    %c1 = arith.constant 1 : index
    %c0_3 = arith.constant 0 : index
    %2 = vector.load %arg2[%c1, %c0_3] : memref<8x128xf32, #tpu.memory_space<vmem>>, vector<1x128xf32>
    %c2 = arith.constant 2 : index
    %c0_4 = arith.constant 0 : index
    %3 = vector.load %arg2[%c2, %c0_4] : memref<8x128xf32, #tpu.memory_space<vmem>>, vector<1x128xf32>
    %c3 = arith.constant 3 : index
    %c0_5 = arith.constant 0 : index
    %4 = vector.load %arg2[%c3, %c0_5] : memref<8x128xf32, #tpu.memory_space<vmem>>, vector<1x128xf32>
    %c4 = arith.constant 4 : index
    %c0_6 = arith.constant 0 : index
    %5 = vector.load %arg2[%c4, %c0_6] : memref<8x128xf32, #tpu.memory_space<vmem>>, vector<1x128xf32>
    %c5 = arith.constant 5 : index
    %c0_7 = arith.constant 0 : index
    %6 = vector.load %arg2[%c5, %c0_7] : memref<8x128xf32, #tpu.memory_space<vmem>>, vector<1x128xf32>
    %cst = arith.constant dense<0.000000e+00> : vector<8xf32>
    %7 = vector.multi_reduction <add>, %0, %cst [1] : vector<8x128xf32> to vector<8xf32>
    %8 = vector.shape_cast %7 : vector<8xf32> to vector<8x1xf32>
    %cst_8 = arith.constant 3.125000e-02 : f32
    %9 = vector.broadcast %cst_8 : f32 to vector<8x1xf32>
    %10 = arith.mulf %8, %9 : vector<8x1xf32>
    %11 = vector.broadcast %10 : vector<8x1xf32> to vector<8x128xf32>
    %12 = arith.subf %0, %11 : vector<8x128xf32>
    %13 = arith.mulf %12, %12 : vector<8x128xf32>
    %cst_9 = arith.constant dense<0.000000e+00> : vector<8xf32>
    %14 = vector.multi_reduction <add>, %13, %cst_9 [1] : vector<8x128xf32> to vector<8xf32>
    %15 = vector.shape_cast %14 : vector<8xf32> to vector<8x1xf32>
    %16 = arith.mulf %10, %10 : vector<8x1xf32>
    %cst_10 = arith.constant 9.600000e+01 : f32
    %17 = vector.broadcast %cst_10 : f32 to vector<8x1xf32>
    %18 = arith.mulf %17, %16 : vector<8x1xf32>
    %19 = arith.subf %15, %18 : vector<8x1xf32>
    %cst_11 = arith.constant 3.125000e-02 : f32
    %20 = vector.broadcast %cst_11 : f32 to vector<8x1xf32>
    %21 = arith.mulf %19, %20 : vector<8x1xf32>
    %cst_12 = arith.constant 9.99999974E-6 : f32
    %22 = vector.broadcast %cst_12 : f32 to vector<8x1xf32>
    %23 = arith.addf %21, %22 : vector<8x1xf32>
    %24 = math.rsqrt %23 : vector<8x1xf32>
    %25 = vector.broadcast %24 : vector<8x1xf32> to vector<8x128xf32>
    %26 = arith.mulf %12, %25 : vector<8x128xf32>
    %27 = vector.broadcast %1 : vector<1x128xf32> to vector<8x128xf32>
    %28 = arith.mulf %26, %27 : vector<8x128xf32>
    %29 = vector.broadcast %2 : vector<1x128xf32> to vector<8x128xf32>
    %30 = arith.addf %28, %29 : vector<8x128xf32>
    %cst_13 = arith.constant 0.000000e+00 : f32
    %31 = vector.broadcast %cst_13 : f32 to vector<8x128xf32>
    %32 = arith.maximumf %30, %31 : vector<8x128xf32>
    %c0_14 = arith.constant 0 : index
    %c0_15 = arith.constant 0 : index
    %33 = vector.load %arg3[%c0_14, %c0_15] : memref<128x128xf32, #tpu.memory_space<vmem>>, vector<128x128xf32>
    %cst_16 = arith.constant dense<0.000000e+00> : vector<8x128xf32>
    %34 = tpu.matmul %32, %33, %cst_16 {dimension_numbers = #tpu.dot_dimension_numbers<[1], [0], [0], [1], [0, 0, 1, 1], [], []>} : vector<8x128xf32>, vector<128x128xf32>, vector<8x128xf32> -> vector<8x128xf32>
    %35 = vector.broadcast %3 : vector<1x128xf32> to vector<8x128xf32>
    %36 = arith.addf %34, %35 : vector<8x128xf32>
    %cst_17 = arith.constant dense<0.000000e+00> : vector<8xf32>
    %37 = vector.multi_reduction <add>, %36, %cst_17 [1] : vector<8x128xf32> to vector<8xf32>
    %38 = vector.shape_cast %37 : vector<8xf32> to vector<8x1xf32>
    %cst_18 = arith.constant 3.125000e-02 : f32
    %39 = vector.broadcast %cst_18 : f32 to vector<8x1xf32>
    %40 = arith.mulf %38, %39 : vector<8x1xf32>
    %41 = vector.broadcast %40 : vector<8x1xf32> to vector<8x128xf32>
    %42 = arith.subf %36, %41 : vector<8x128xf32>
    %43 = arith.mulf %42, %42 : vector<8x128xf32>
    %cst_19 = arith.constant dense<0.000000e+00> : vector<8xf32>
    %44 = vector.multi_reduction <add>, %43, %cst_19 [1] : vector<8x128xf32> to vector<8xf32>
    %45 = vector.shape_cast %44 : vector<8xf32> to vector<8x1xf32>
    %46 = arith.mulf %40, %40 : vector<8x1xf32>
    %cst_20 = arith.constant 9.600000e+01 : f32
    %47 = vector.broadcast %cst_20 : f32 to vector<8x1xf32>
    %48 = arith.mulf %47, %46 : vector<8x1xf32>
    %49 = arith.subf %45, %48 : vector<8x1xf32>
    %cst_21 = arith.constant 3.125000e-02 : f32
    %50 = vector.broadcast %cst_21 : f32 to vector<8x1xf32>
    %51 = arith.mulf %49, %50 : vector<8x1xf32>
    %cst_22 = arith.constant 9.99999974E-6 : f32
    %52 = vector.broadcast %cst_22 : f32 to vector<8x1xf32>
    %53 = arith.addf %51, %52 : vector<8x1xf32>
    %54 = math.rsqrt %53 : vector<8x1xf32>
    %55 = vector.broadcast %54 : vector<8x1xf32> to vector<8x128xf32>
    %56 = arith.mulf %42, %55 : vector<8x128xf32>
    %57 = vector.broadcast %4 : vector<1x128xf32> to vector<8x128xf32>
    %58 = arith.mulf %56, %57 : vector<8x128xf32>
    %59 = vector.broadcast %5 : vector<1x128xf32> to vector<8x128xf32>
    %60 = arith.addf %58, %59 : vector<8x128xf32>
    %cst_23 = arith.constant 0.000000e+00 : f32
    %61 = vector.broadcast %cst_23 : f32 to vector<8x128xf32>
    %62 = arith.maximumf %60, %61 : vector<8x128xf32>
    %c0_24 = arith.constant 0 : index
    %c0_25 = arith.constant 0 : index
    %63 = vector.load %arg4[%c0_24, %c0_25] : memref<128x128xf32, #tpu.memory_space<vmem>>, vector<128x128xf32>
    %cst_26 = arith.constant dense<0.000000e+00> : vector<8x128xf32>
    %64 = tpu.matmul %62, %63, %cst_26 {dimension_numbers = #tpu.dot_dimension_numbers<[1], [0], [0], [1], [0, 0, 1, 1], [], []>} : vector<8x128xf32>, vector<128x128xf32>, vector<8x128xf32> -> vector<8x128xf32>
    %65 = vector.broadcast %6 : vector<1x128xf32> to vector<8x128xf32>
    %66 = arith.addf %64, %65 : vector<8x128xf32>
    %67 = arith.addf %0, %66 : vector<8x128xf32>
    %c0_27 = arith.constant 0 : index
    %c0_28 = arith.constant 0 : index
    %68 = vector.load %arg5[%c0_27, %c0_28] : memref<8x128xf32, #tpu.memory_space<vmem>>, vector<8x128xf32>
    tpu.vector_store %arg5[%c0_27, %c0_28], %67 {strides = array<i32>} : memref<8x128xf32, #tpu.memory_space<vmem>>, vector<8x128xf32>,
    return
  }
  func.func @transform_0(%arg0: i32) -> (i32, i32) {
    %c0_i32 = arith.constant 0 : i32
    %c0_i32_0 = arith.constant 0 : i32
    return %arg0, %c0_i32 : i32, i32
  }
  func.func @transform_1(%arg0: i32) -> (i32, i32) {
    %c0_i32 = arith.constant 0 : i32
    %c0_i32_0 = arith.constant 0 : i32
    %c0_i32_1 = arith.constant 0 : i32
    return %c0_i32, %c0_i32_0 : i32, i32
  }
  func.func @transform_2(%arg0: i32) -> (i32, i32) {
    %c0_i32 = arith.constant 0 : i32
    %c0_i32_0 = arith.constant 0 : i32
    %c0_i32_1 = arith.constant 0 : i32
    return %c0_i32, %c0_i32_0 : i32, i32
  }
  func.func @transform_3(%arg0: i32) -> (i32, i32) {
    %c0_i32 = arith.constant 0 : i32
    %c0_i32_0 = arith.constant 0 : i32
    %c0_i32_1 = arith.constant 0 : i32
    return %c0_i32, %c0_i32_0 : i32, i32
  }
  func.func @transform_4(%arg0: i32) -> (i32, i32) {
    %c0_i32 = arith.constant 0 : i32
    %c0_i32_0 = arith.constant 0 : i32
    return %arg0, %c0_i32 : i32, i32
  }
}

</mosaic_0001>

<llo_original>
// kernel: tpu_custom_call.1
$region0: #{tpu_custom_call.1}
  #allocation0 [shape = 'u32[]', space=smem, size = 0x4, offset = 0x4, fixed_abs, tag = 'smem constant byte address 0x4 - core index']
  #allocation1 [shape = 'u32[72,128]{1,0:T(1,128)}', space=vmem, size = 0x9000, scoped, tag = 'internal scratch']
  %s0 = inlined_call_operand.hbm [shape: f32[8,128], index: 0, kind: input, shape index: {}]
  %s1 = inlined_call_operand.hbm [shape: f32[8,128], index: 1, kind: input, shape index: {}]
  %s2 = inlined_call_operand.hbm [shape: f32[128,128], index: 2, kind: input, shape index: {}]
  %s3 = inlined_call_operand.hbm [shape: f32[128,128], index: 3, kind: input, shape index: {}]
  %s4 = inlined_call_operand.hbm [shape: f32[8,128], index: 4, kind: output, shape index: {}]
  %s5 = sld [smem:[#allocation0]]
  $region42: #{tpu_custom_call.1} parent=0
    _
  %s7 = ssub.s32 1, %s5
  %s8 = scalar_select 0, %s7, %s5
  $region1: #{tpu_custom_call.1} parent=0
    #allocation2 [shape = 'u8[4096]{0}', space=vmem, size = 0x1000, scoped, tag = 'input window, operand 0, single buffered']
    #allocation3 [shape = 's32[1]{0}', space=sflag, size = 0x4, scoped, tag = 'scoped memory for tpu_custom_call.1']
    #allocation4 [shape = 's32[1]{0}', space=sflag, size = 0x4, scoped, tag = 'scoped memory for tpu_custom_call.1']
    #allocation5 [shape = 'u8[4096]{0}', space=vmem, size = 0x1000, scoped, tag = 'input window, operand 1, single buffered']
    #allocation6 [shape = 's32[1]{0}', space=sflag, size = 0x4, scoped, tag = 'scoped memory for tpu_custom_call.1']
    #allocation7 [shape = 'u8[65536]{0}', space=vmem, size = 0x10000, scoped, tag = 'input window, operand 2, single buffered']
    #allocation8 [shape = 'u8[65536]{0}', space=vmem, size = 0x10000, scoped, tag = 'input window, operand 3, single buffered']
    #allocation9 [shape = 's32[1]{0}', space=sflag, size = 0x4, scoped, tag = 'scoped memory for tpu_custom_call.1']
    #allocation10 [shape = 'u8[4096]{0}', space=vmem, size = 0x1000, scoped, tag = 'output window, operand 0, single buffered']
    %9 = vsyncpa [#allocation3], 0
    %10 = vsyncpa [#allocation6], 0
    %11 = vsyncpa [#allocation9], 0
    %12 = vsyncpa [#allocation4], 0
    // Predicated region
    $region2: #{tpu_custom_call.1} parent=1 // pred_check
      _
    $region3: #{tpu_custom_call.1} parent=1 // pred_check_branch
      %14 = sbr.rel (0) target = $region5
    $region4: #{tpu_custom_call.1} parent=1 // pred_region
      %16 = vsyncadd [#allocation3], 0
      %s18 = sshll.u32 %s0, 4
      %s19 = int_to_ptr.hbm [resolvable:$true] %s18
      %s20 = sshll.u32 [#allocation2], 4
      %s21 = int_to_ptr.vmem [resolvable:$true] %s20
      %23 = dma.hbm_to_vmem [thread:$0]  %s19, 128, %s21, [#allocation3]
    $region5: #{tpu_custom_call.1} parent=1 // pred_fallthru
      _
    // Predicated region
    $region6: #{tpu_custom_call.1} parent=1 // pred_check
      _
    $region7: #{tpu_custom_call.1} parent=1 // pred_check_branch
      %25 = sbr.rel (0) target = $region9
    $region8: #{tpu_custom_call.1} parent=1 // pred_region
      %27 = vsyncadd [#allocation6], 0
      %s29 = sshll.u32 %s1, 4
      %s30 = int_to_ptr.hbm [resolvable:$true] %s29
      %s31 = sshll.u32 [#allocation5], 4
      %s32 = int_to_ptr.vmem [resolvable:$true] %s31
      %34 = dma.hbm_to_vmem [thread:$0]  %s30, 128, %s32, [#allocation6]
    $region9: #{tpu_custom_call.1} parent=1 // pred_fallthru
      _
    // Predicated region
    $region10: #{tpu_custom_call.1} parent=1 // pred_check
      _
    $region11: #{tpu_custom_call.1} parent=1 // pred_check_branch
      %36 = sbr.rel (0) target = $region13
    $region12: #{tpu_custom_call.1} parent=1 // pred_region
      %38 = vsyncadd [#allocation6], 0
      %s39 = sshll.u32 %s2, 4
      %s40 = int_to_ptr.hbm [resolvable:$true] %s39
      %s41 = sshll.u32 [#allocation7], 4
      %s42 = int_to_ptr.vmem [resolvable:$true] %s41
      %47 = dma.hbm_to_vmem [thread:$0]  %s40, 2048, %s42, [#allocation6], 128, 128, 8
    $region13: #{tpu_custom_call.1} parent=1 // pred_fallthru
      _
    // Predicated region
    $region14: #{tpu_custom_call.1} parent=1 // pred_check
      _
    $region15: #{tpu_custom_call.1} parent=1 // pred_check_branch
      %49 = sbr.rel (0) target = $region17
    $region16: #{tpu_custom_call.1} parent=1 // pred_region
      %51 = vsyncadd [#allocation9], 0
      %s52 = sshll.u32 %s3, 4
      %s53 = int_to_ptr.hbm [resolvable:$true] %s52
      %s54 = sshll.u32 [#allocation8], 4
      %s55 = int_to_ptr.vmem [resolvable:$true] %s54
      %60 = dma.hbm_to_vmem [thread:$0]  %s53, 2048, %s55, [#allocation9], 128, 128, 8
    $region17: #{tpu_custom_call.1} parent=1 // pred_fallthru
      _
    // Predicated region
    $region18: #{tpu_custom_call.1} parent=1 // pred_check
      _
    $region19: #{tpu_custom_call.1} parent=1 // pred_check_branch
      %62 = sbr.rel (0) target = $region21
    $region20: #{tpu_custom_call.1} parent=1 // pred_region
      %64 = dma.done [#allocation3], 128
    $region21: #{tpu_custom_call.1} parent=1 // pred_fallthru
      _
    // Predicated region
    $region22: #{tpu_custom_call.1} parent=1 // pred_check
      _
    $region23: #{tpu_custom_call.1} parent=1 // pred_check_branch
      %66 = sbr.rel (0) target = $region25
    $region24: #{tpu_custom_call.1} parent=1 // pred_region
      %68 = dma.done [#allocation6], 128
    $region25: #{tpu_custom_call.1} parent=1 // pred_fallthru
      _
    // Predicated region
    $region26: #{tpu_custom_call.1} parent=1 // pred_check
      _
    $region27: #{tpu_custom_call.1} parent=1 // pred_check_branch
      %70 = sbr.rel (0) target = $region29
    $region28: #{tpu_custom_call.1} parent=1 // pred_region
      %72 = dma.done [#allocation6], 2048
    $region29: #{tpu_custom_call.1} parent=1 // pred_fallthru
      _
    // Predicated region
    $region30: #{tpu_custom_call.1} parent=1 // pred_check
      _
    $region31: #{tpu_custom_call.1} parent=1 // pred_check_branch
      %74 = sbr.rel (0) target = $region33
    $region32: #{tpu_custom_call.1} parent=1 // pred_region
      %76 = dma.done [#allocation9], 2048
    $region33: #{tpu_custom_call.1} parent=1 // pred_fallthru
      _
    %v77 = vld [vmem:[#allocation2] sm:$0xff]
    %v78 = vld [vmem:[#allocation5] sm:$0x1]
    %v79 = vld [vmem:[#allocation5 + $0x1] sm:$0x1]
    %v80 = vld [vmem:[#allocation5 + $0x2] sm:$0x1]
    %v81 = vld [vmem:[#allocation5 + $0x3] sm:$0x1]
    %v82 = vld [vmem:[#allocation5 + $0x4] sm:$0x1]
    %v83 = vld [vmem:[#allocation5 + $0x5] sm:$0x1]
    %84 = vadd.xlane.f32.xlu0 %v77
    %v85 = vpop.xlane.xlu0 %84
    %v86 = vmul.f32 %v85, 0.03125
    %v87 = vsub.f32 %v77, %v86
    %v88 = vmul.f32 %v87, %v87
    %89 = vadd.xlane.f32.xlu0 %v88
    %v90 = vpop.xlane.xlu0 %89
    %v91 = vmul.f32 %v86, %v86
    %v92 = vmul.f32 %v91, 96.0
    %v93 = vsub.f32 %v90, %v92
    %v94 = vmul.f32 %v93, 0.03125
    %v95 = vadd.f32 %v94, 1e-05
    %v96 = vrsqrt.pop %v95
    %v97 = vmul.f32 %v96, %v95
    %v98 = vmul.f32 %v97, %v96
    %v99 = vmul.f32 0.5, %v98
    %v100 = vsub.f32 1.5, %v99
    %v101 = vmul.f32 %v96, %v100
    %vm102 = vweird.f32 %v95
    %vm103 = vweird.f32 %v96
    %vm104 = vmor %vm102, %vm103
    %v105 = vsel %vm104, %v96, %v101
    %v106 = vmul.f32 %v87, %v105
    %v107 = vperm.slane %v78, 0
    %v108 = vmul.f32 %v106, %v107
    %v109 = vperm.slane %v79, 0
    %v110 = vadd.f32 %v108, %v109
    %v111 = vmax.f32 %v110, 0.0
    %v112 = vld [vmem:[#allocation7] sm:$0xff]
    %v113 = vld [vmem:[#allocation7 + $0x8] sm:$0xff]
    %v114 = vld [vmem:[#allocation7 + $0x10] sm:$0xff]
    %v115 = vld [vmem:[#allocation7 + $0x18] sm:$0xff]
    %v116 = vld [vmem:[#allocation7 + $0x20] sm:$0xff]
    %v117 = vld [vmem:[#allocation7 + $0x28] sm:$0xff]
    %v118 = vld [vmem:[#allocation7 + $0x30] sm:$0xff]
    %v119 = vld [vmem:[#allocation7 + $0x38] sm:$0xff]
    %v120 = vld [vmem:[#allocation7 + $0x40] sm:$0xff]
    %v121 = vld [vmem:[#allocation7 + $0x48] sm:$0xff]
    %v122 = vld [vmem:[#allocation7 + $0x50] sm:$0xff]
    %v123 = vld [vmem:[#allocation7 + $0x58] sm:$0xff]
    %v124 = vld [vmem:[#allocation7 + $0x60] sm:$0xff]
    %v125 = vld [vmem:[#allocation7 + $0x68] sm:$0xff]
    %v126 = vld [vmem:[#allocation7 + $0x70] sm:$0xff]
    %v127 = vld [vmem:[#allocation7 + $0x78] sm:$0xff]
    %v128 = vperm.slane %v80, 0
    %129 = vmatpush.msra.mxu0 %v127
    %130 = vmatpush.msra.mxu0 %v126
    %131 = vmatpush.msra.mxu0 %v125
    %132 = vmatpush.msra.mxu0 %v124
    %133 = vmatpush.msra.mxu0 %v123
    %134 = vmatpush.msra.mxu0 %v122
    %135 = vmatpush.msra.mxu0 %v121
    %136 = vmatpush.msra.mxu0 %v120
    %137 = vmatpush.msra.mxu0 %v119
    %138 = vmatpush.msra.mxu0 %v118
    %139 = vmatpush.msra.mxu0 %v117
    %140 = vmatpush.msra.mxu0 %v116
    %141 = vmatpush.msra.mxu0 %v115
    %142 = vmatpush.msra.mxu0 %v114
    %143 = vmatpush.msra.mxu0 %v113
    %144 = vmatpush.msra.mxu0 %v112
    %145 = vmatmul.f32.gmra.mxu0 %v111
    %v146 = vpop.f32.mrf.mxu0
    %v147 = vadd.f32 %v128, %v146
    %148 = vdwg.mxu0
    %149 = vadd.xlane.f32.xlu0 %v147
    %v150 = vpop.xlane.xlu0 %149
    %v151 = vmul.f32 %v150, 0.03125
    %v152 = vsub.f32 %v147, %v151
    %v153 = vmul.f32 %v152, %v152
    %154 = vadd.xlane.f32.xlu0 %v153
    %v155 = vpop.xlane.xlu0 %154
    %v156 = vmul.f32 %v151, %v151
    %v157 = vmul.f32 %v156, 96.0
    %v158 = vsub.f32 %v155, %v157
    %v159 = vmul.f32 %v158, 0.03125
    %v160 = vadd.f32 %v159, 1e-05
    %v161 = vrsqrt.pop %v160
    %v162 = vmul.f32 %v161, %v160
    %v163 = vmul.f32 %v162, %v161
    %v164 = vmul.f32 0.5, %v163
    %v165 = vsub.f32 1.5, %v164
    %v166 = vmul.f32 %v161, %v165
    %vm167 = vweird.f32 %v160
    %vm168 = vweird.f32 %v161
    %vm169 = vmor %vm167, %vm168
    %v170 = vsel %vm169, %v161, %v166
    %v171 = vmul.f32 %v152, %v170
    %v172 = vperm.slane %v81, 0
    %v173 = vmul.f32 %v171, %v172
    %v174 = vperm.slane %v82, 0
    %v175 = vadd.f32 %v173, %v174
    %v176 = vmax.f32 %v175, 0.0
    %v177 = vld [vmem:[#allocation8] sm:$0xff]
    %v178 = vld [vmem:[#allocation8 + $0x8] sm:$0xff]
    %v179 = vld [vmem:[#allocation8 + $0x10] sm:$0xff]
    %v180 = vld [vmem:[#allocation8 + $0x18] sm:$0xff]
    %v181 = vld [vmem:[#allocation8 + $0x20] sm:$0xff]
    %v182 = vld [vmem:[#allocation8 + $0x28] sm:$0xff]
    %v183 = vld [vmem:[#allocation8 + $0x30] sm:$0xff]
    %v184 = vld [vmem:[#allocation8 + $0x38] sm:$0xff]
    %v185 = vld [vmem:[#allocation8 + $0x40] sm:$0xff]
    %v186 = vld [vmem:[#allocation8 + $0x48] sm:$0xff]
    %v187 = vld [vmem:[#allocation8 + $0x50] sm:$0xff]
    %v188 = vld [vmem:[#allocation8 + $0x58] sm:$0xff]
    %v189 = vld [vmem:[#allocation8 + $0x60] sm:$0xff]
    %v190 = vld [vmem:[#allocation8 + $0x68] sm:$0xff]
    %v191 = vld [vmem:[#allocation8 + $0x70] sm:$0xff]
    %v192 = vld [vmem:[#allocation8 + $0x78] sm:$0xff]
    %v193 = vperm.slane %v83, 0
    %194 = vmatpush.msra.mxu0 %v192
    %195 = vmatpush.msra.mxu0 %v191
    %196 = vmatpush.msra.mxu0 %v190
    %197 = vmatpush.msra.mxu0 %v189
    %198 = vmatpush.msra.mxu0 %v188
    %199 = vmatpush.msra.mxu0 %v187
    %200 = vmatpush.msra.mxu0 %v186
    %201 = vmatpush.msra.mxu0 %v185
    %202 = vmatpush.msra.mxu0 %v184
    %203 = vmatpush.msra.mxu0 %v183
    %204 = vmatpush.msra.mxu0 %v182
    %205 = vmatpush.msra.mxu0 %v181
    %206 = vmatpush.msra.mxu0 %v180
    %207 = vmatpush.msra.mxu0 %v179
    %208 = vmatpush.msra.mxu0 %v178
    %209 = vmatpush.msra.mxu0 %v177
    %210 = vmatmul.f32.gmra.mxu0 %v176
    %v211 = vpop.f32.mrf.mxu0
    %v212 = vadd.f32 %v193, %v211
    %213 = vdwg.mxu0
    %v214 = vadd.f32 %v77, %v212
    %215 = vst [vmem:[#allocation10] sm:$0xff] %v214
    // Predicated region
    $region34: #{tpu_custom_call.1} parent=1 // pred_check
      _
    $region35: #{tpu_custom_call.1} parent=1 // pred_check_branch
      %217 = sbr.rel (0) target = $region37
    $region36: #{tpu_custom_call.1} parent=1 // pred_region
      %219 = vsyncadd [#allocation4], 0
      %s221 = sshll.u32 [#allocation10], 4
      %s222 = int_to_ptr.vmem [resolvable:$true] %s221
      %s223 = sshll.u32 %s4, 4
      %s224 = int_to_ptr.hbm [resolvable:$true] %s223
      %226 = dma.vmem_to_hbm [thread:$0]  %s222, 128, %s224, [#allocation4]
    $region37: #{tpu_custom_call.1} parent=1 // pred_fallthru
      _
    // Predicated region
    $region38: #{tpu_custom_call.1} parent=1 // pred_check
      _
    $region39: #{tpu_custom_call.1} parent=1 // pred_check_branch
      %228 = sbr.rel (0) target = $region41
    $region40: #{tpu_custom_call.1} parent=1 // pred_region
      %230 = dma.done [#allocation4], 128
    $region41: #{tpu_custom_call.1} parent=1 // pred_fallthru
      _
    %231 = vsyncpa [#allocation3], 1
    %232 = vsyncpa [#allocation6], 1
    %233 = vsyncpa [#allocation9], 1
    %234 = vsyncpa [#allocation4], 1

// kernel: tpu_custom_call.1
$region0: #{tpu_custom_call.1}
  #allocation0 [shape = 'u32[]', space=smem, size = 0x4, offset = 0x4, fixed_abs, tag = 'smem constant byte address 0x4 - core index']
  #allocation1 [shape = 'u32[72,128]{1,0:T(1,128)}', space=vmem, size = 0x9000, scoped, tag = 'internal scratch']
  %s0 = inlined_call_operand.hbm [shape: f32[8,128], index: 0, kind: input, shape index: {}]
  %s1 = inlined_call_operand.hbm [shape: f32[8,128], index: 1, kind: input, shape index: {}]
  %s2 = inlined_call_operand.hbm [shape: f32[128,128], index: 2, kind: input, shape index: {}]
  %s3 = inlined_call_operand.hbm [shape: f32[128,128], index: 3, kind: input, shape index: {}]
  %s4 = inlined_call_operand.hbm [shape: f32[8,128], index: 4, kind: output, shape index: {}]
  %s5 = sld [smem:[#allocation0]]
  $region42: #{tpu_custom_call.1} parent=0
    _
  %s7 = ssub.s32 1, %s5
  %s8 = scalar_select 0, %s7, %s5
  $region1: #{tpu_custom_call.1} parent=0
    #allocation2 [shape = 'u8[4096]{0}', space=vmem, size = 0x1000, scoped, tag = 'input window, operand 0, single buffered']
    #allocation3 [shape = 's32[1]{0}', space=sflag, size = 0x4, scoped, tag = 'scoped memory for tpu_custom_call.1']
    #allocation4 [shape = 's32[1]{0}', space=sflag, size = 0x4, scoped, tag = 'scoped memory for tpu_custom_call.1']
    #allocation5 [shape = 'u8[4096]{0}', space=vmem, size = 0x1000, scoped, tag = 'input window, operand 1, single buffered']
    #allocation6 [shape = 's32[1]{0}', space=sflag, size = 0x4, scoped, tag = 'scoped memory for tpu_custom_call.1']
    #allocation7 [shape = 'u8[65536]{0}', space=vmem, size = 0x10000, scoped, tag = 'input window, operand 2, single buffered']
    #allocation8 [shape = 'u8[65536]{0}', space=vmem, size = 0x10000, scoped, tag = 'input window, operand 3, single buffered']
    #allocation9 [shape = 's32[1]{0}', space=sflag, size = 0x4, scoped, tag = 'scoped memory for tpu_custom_call.1']
    #allocation10 [shape = 'u8[4096]{0}', space=vmem, size = 0x1000, scoped, tag = 'output window, operand 0, single buffered']
    %9 = vsyncpa [#allocation3], 0
    %10 = vsyncpa [#allocation6], 0
    %11 = vsyncpa [#allocation9], 0
    %12 = vsyncpa [#allocation4], 0
    // Predicated region
    $region2: #{tpu_custom_call.1} parent=1 // pred_check
      _
    $region3: #{tpu_custom_call.1} parent=1 // pred_check_branch
      %14 = sbr.rel (0) target = $region5
    $region4: #{tpu_custom_call.1} parent=1 // pred_region
      %16 = vsyncadd [#allocation3], 0
      %s18 = sshll.u32 %s0, 4
      %s19 = int_to_ptr.hbm [resolvable:$true] %s18
      %s20 = sshll.u32 [#allocation2], 4
      %s21 = int_to_ptr.vmem [resolvable:$true] %s20
      %23 = dma.hbm_to_vmem [thread:$0]  %s19, 128, %s21, [#allocation3]
    $region5: #{tpu_custom_call.1} parent=1 // pred_fallthru
      _
    // Predicated region
    $region6: #{tpu_custom_call.1} parent=1 // pred_check
      _
    $region7: #{tpu_custom_call.1} parent=1 // pred_check_branch
      %25 = sbr.rel (0) target = $region9
    $region8: #{tpu_custom_call.1} parent=1 // pred_region
      %27 = vsyncadd [#allocation6], 0
      %s29 = sshll.u32 %s1, 4
      %s30 = int_to_ptr.hbm [resolvable:$true] %s29
      %s31 = sshll.u32 [#allocation5], 4
      %s32 = int_to_ptr.vmem [resolvable:$true] %s31
      %34 = dma.hbm_to_vmem [thread:$0]  %s30, 128, %s32, [#allocation6]
    $region9: #{tpu_custom_call.1} parent=1 // pred_fallthru
      _
    // Predicated region
    $region10: #{tpu_custom_call.1} parent=1 // pred_check
      _
    $region11: #{tpu_custom_call.1} parent=1 // pred_check_branch
      %36 = sbr.rel (0) target = $region13
    $region12: #{tpu_custom_call.1} parent=1 // pred_region
      %38 = vsyncadd [#allocation6], 0
      %s39 = sshll.u32 %s2, 4
      %s40 = int_to_ptr.hbm [resolvable:$true] %s39
      %s41 = sshll.u32 [#allocation7], 4
      %s42 = int_to_ptr.vmem [resolvable:$true] %s41
      %47 = dma.hbm_to_vmem [thread:$0]  %s40, 2048, %s42, [#allocation6], 128, 128, 8
    $region13: #{tpu_custom_call.1} parent=1 // pred_fallthru
      _
    // Predicated region
    $region14: #{tpu_custom_call.1} parent=1 // pred_check
      _
    $region15: #{tpu_custom_call.1} parent=1 // pred_check_branch
      %49 = sbr.rel (0) target = $region17
    $region16: #{tpu_custom_call.1} parent=1 // pred_region
      %51 = vsyncadd [#allocation9], 0
      %s52 = sshll.u32 %s3, 4
      %s53 = int_to_ptr.hbm [resolvable:$true] %s52
      %s54 = sshll.u32 [#allocation8], 4
      %s55 = int_to_ptr.vmem [resolvable:$true] %s54
      %60 = dma.hbm_to_vmem [thread:$0]  %s53, 2048, %s55, [#allocation9], 128, 128, 8
    $region17: #{tpu_custom_call.1} parent=1 // pred_fallthru
      _
    // Predicated region
    $region18: #{tpu_custom_call.1} parent=1 // pred_check
      _
    $region19: #{tpu_custom_call.1} parent=1 // pred_check_branch
      %62 = sbr.rel (0) target = $region21
    $region20: #{tpu_custom_call.1} parent=1 // pred_region
      %64 = dma.done [#allocation3], 128
    $region21: #{tpu_custom_call.1} parent=1 // pred_fallthru
      _
    // Predicated region
    $region22: #{tpu_custom_call.1} parent=1 // pred_check
      _
    $region23: #{tpu_custom_call.1} parent=1 // pred_check_branch
      %66 = sbr.rel (0) target = $region25
    $region24: #{tpu_custom_call.1} parent=1 // pred_region
      %68 = dma.done [#allocation6], 128
    $region25: #{tpu_custom_call.1} parent=1 // pred_fallthru
      _
    // Predicated region
    $region26: #{tpu_custom_call.1} parent=1 // pred_check
      _
    $region27: #{tpu_custom_call.1} parent=1 // pred_check_branch
      %70 = sbr.rel (0) target = $region29
    $region28: #{tpu_custom_call.1} parent=1 // pred_region
      %72 = dma.done [#allocation6], 2048
    $region29: #{tpu_custom_call.1} parent=1 // pred_fallthru
      _
    // Predicated region
    $region30: #{tpu_custom_call.1} parent=1 // pred_check
      _
    $region31: #{tpu_custom_call.1} parent=1 // pred_check_branch
      %74 = sbr.rel (0) target = $region33
    $region32: #{tpu_custom_call.1} parent=1 // pred_region
      %76 = dma.done [#allocation9], 2048
    $region33: #{tpu_custom_call.1} parent=1 // pred_fallthru
      _
    %v77 = vld [vmem:[#allocation2] sm:$0xff]
    %v78 = vld [vmem:[#allocation5] sm:$0x1]
    %v79 = vld [vmem:[#allocation5 + $0x1] sm:$0x1]
    %v80 = vld [vmem:[#allocation5 + $0x2] sm:$0x1]
    %v81 = vld [vmem:[#allocation5 + $0x3] sm:$0x1]
    %v82 = vld [vmem:[#allocation5 + $0x4] sm:$0x1]
    %v83 = vld [vmem:[#allocation5 + $0x5] sm:$0x1]
    %84 = vadd.xlane.f32.xlu0 %v77
    %v85 = vpop.xlane.xlu0 %84
    %v86 = vmul.f32 %v85, 0.03125
    %v87 = vsub.f32 %v77, %v86
    %v88 = vmul.f32 %v87, %v87
    %89 = vadd.xlane.f32.xlu0 %v88
    %v90 = vpop.xlane.xlu0 %89
    %v91 = vmul.f32 %v86, %v86
    %v92 = vmul.f32 %v91, 96.0
    %v93 = vsub.f32 %v90, %v92
    %v94 = vmul.f32 %v93, 0.03125
    %v95 = vadd.f32 %v94, 1e-05
    %v96 = vrsqrt.pop %v95
    %v97 = vmul.f32 %v96, %v95
    %v98 = vmul.f32 %v97, %v96
    %v99 = vmul.f32 0.5, %v98
    %v100 = vsub.f32 1.5, %v99
    %v101 = vmul.f32 %v96, %v100
    %vm102 = vweird.f32 %v95
    %vm103 = vweird.f32 %v96
    %vm104 = vmor %vm102, %vm103
    %v105 = vsel %vm104, %v96, %v101
    %v106 = vmul.f32 %v87, %v105
    %v107 = vperm.slane %v78, 0
    %v108 = vmul.f32 %v106, %v107
    %v109 = vperm.slane %v79, 0
    %v110 = vadd.f32 %v108, %v109
    %v111 = vmax.f32 %v110, 0.0
    %v112 = vld [vmem:[#allocation7] sm:$0xff]
    %v113 = vld [vmem:[#allocation7 + $0x8] sm:$0xff]
    %v114 = vld [vmem:[#allocation7 + $0x10] sm:$0xff]
    %v115 = vld [vmem:[#allocation7 + $0x18] sm:$0xff]
    %v116 = vld [vmem:[#allocation7 + $0x20] sm:$0xff]
    %v117 = vld [vmem:[#allocation7 + $0x28] sm:$0xff]
    %v118 = vld [vmem:[#allocation7 + $0x30] sm:$0xff]
    %v119 = vld [vmem:[#allocation7 + $0x38] sm:$0xff]
    %v120 = vld [vmem:[#allocation7 + $0x40] sm:$0xff]
    %v121 = vld [vmem:[#allocation7 + $0x48] sm:$0xff]
    %v122 = vld [vmem:[#allocation7 + $0x50] sm:$0xff]
    %v123 = vld [vmem:[#allocation7 + $0x58] sm:$0xff]
    %v124 = vld [vmem:[#allocation7 + $0x60] sm:$0xff]
    %v125 = vld [vmem:[#allocation7 + $0x68] sm:$0xff]
    %v126 = vld [vmem:[#allocation7 + $0x70] sm:$0xff]
    %v127 = vld [vmem:[#allocation7 + $0x78] sm:$0xff]
    %v128 = vperm.slane %v80, 0
    %129 = vmatpush.msra.mxu0 %v127
    %130 = vmatpush.msra.mxu0 %v126
    %131 = vmatpush.msra.mxu0 %v125
    %132 = vmatpush.msra.mxu0 %v124
    %133 = vmatpush.msra.mxu0 %v123
    %134 = vmatpush.msra.mxu0 %v122
    %135 = vmatpush.msra.mxu0 %v121
    %136 = vmatpush.msra.mxu0 %v120
    %137 = vmatpush.msra.mxu0 %v119
    %138 = vmatpush.msra.mxu0 %v118
    %139 = vmatpush.msra.mxu0 %v117
    %140 = vmatpush.msra.mxu0 %v116
    %141 = vmatpush.msra.mxu0 %v115
    %142 = vmatpush.msra.mxu0 %v114
    %143 = vmatpush.msra.mxu0 %v113
    %144 = vmatpush.msra.mxu0 %v112
    %145 = vmatmul.f32.gmra.mxu0 %v111
    %v146 = vpop.f32.mrf.mxu0
    %v147 = vadd.f32 %v128, %v146
    %148 = vdwg.mxu0
    %149 = vadd.xlane.f32.xlu0 %v147
    %v150 = vpop.xlane.xlu0 %149
    %v151 = vmul.f32 %v150, 0.03125
    %v152 = vsub.f32 %v147, %v151
    %v153 = vmul.f32 %v152, %v152
    %154 = vadd.xlane.f32.xlu0 %v153
    %v155 = vpop.xlane.xlu0 %154
    %v156 = vmul.f32 %v151, %v151
    %v157 = vmul.f32 %v156, 96.0
    %v158 = vsub.f32 %v155, %v157
    %v159 = vmul.f32 %v158, 0.03125
    %v160 = vadd.f32 %v159, 1e-05
    %v161 = vrsqrt.pop %v160
    %v162 = vmul.f32 %v161, %v160
    %v163 = vmul.f32 %v162, %v161
    %v164 = vmul.f32 0.5, %v163
    %v165 = vsub.f32 1.5, %v164
    %v166 = vmul.f32 %v161, %v165
    %vm167 = vweird.f32 %v160
    %vm168 = vweird.f32 %v161
    %vm169 = vmor %vm167, %vm168
    %v170 = vsel %vm169, %v161, %v166
    %v171 = vmul.f32 %v152, %v170
    %v172 = vperm.slane %v81, 0
    %v173 = vmul.f32 %v171, %v172
    %v174 = vperm.slane %v82, 0
    %v175 = vadd.f32 %v173, %v174
    %v176 = vmax.f32 %v175, 0.0
    %v177 = vld [vmem:[#allocation8] sm:$0xff]
    %v178 = vld [vmem:[#allocation8 + $0x8] sm:$0xff]
    %v179 = vld [vmem:[#allocation8 + $0x10] sm:$0xff]
    %v180 = vld [vmem:[#allocation8 + $0x18] sm:$0xff]
    %v181 = vld [vmem:[#allocation8 + $0x20] sm:$0xff]
    %v182 = vld [vmem:[#allocation8 + $0x28] sm:$0xff]
    %v183 = vld [vmem:[#allocation8 + $0x30] sm:$0xff]
    %v184 = vld [vmem:[#allocation8 + $0x38] sm:$0xff]
    %v185 = vld [vmem:[#allocation8 + $0x40] sm:$0xff]
    %v186 = vld [vmem:[#allocation8 + $0x48] sm:$0xff]
    %v187 = vld [vmem:[#allocation8 + $0x50] sm:$0xff]
    %v188 = vld [vmem:[#allocation8 + $0x58] sm:$0xff]
    %v189 = vld [vmem:[#allocation8 + $0x60] sm:$0xff]
    %v190 = vld [vmem:[#allocation8 + $0x68] sm:$0xff]
    %v191 = vld [vmem:[#allocation8 + $0x70] sm:$0xff]
    %v192 = vld [vmem:[#allocation8 + $0x78] sm:$0xff]
    %v193 = vperm.slane %v83, 0
    %194 = vmatpush.msra.mxu0 %v192
    %195 = vmatpush.msra.mxu0 %v191
    %196 = vmatpush.msra.mxu0 %v190
    %197 = vmatpush.msra.mxu0 %v189
    %198 = vmatpush.msra.mxu0 %v188
    %199 = vmatpush.msra.mxu0 %v187
    %200 = vmatpush.msra.mxu0 %v186
    %201 = vmatpush.msra.mxu0 %v185
    %202 = vmatpush.msra.mxu0 %v184
    %203 = vmatpush.msra.mxu0 %v183
    %204 = vmatpush.msra.mxu0 %v182
    %205 = vmatpush.msra.mxu0 %v181
    %206 = vmatpush.msra.mxu0 %v180
    %207 = vmatpush.msra.mxu0 %v179
    %208 = vmatpush.msra.mxu0 %v178
    %209 = vmatpush.msra.mxu0 %v177
    %210 = vmatmul.f32.gmra.mxu0 %v176
    %v211 = vpop.f32.mrf.mxu0
    %v212 = vadd.f32 %v193, %v211
    %213 = vdwg.mxu0
    %v214 = vadd.f32 %v77, %v212
    %215 = vst [vmem:[#allocation10] sm:$0xff] %v214
    // Predicated region
    $region34: #{tpu_custom_call.1} parent=1 // pred_check
      _
    $region35: #{tpu_custom_call.1} parent=1 // pred_check_branch
      %217 = sbr.rel (0) target = $region37
    $region36: #{tpu_custom_call.1} parent=1 // pred_region
      %219 = vsyncadd [#allocation4], 0
      %s221 = sshll.u32 [#allocation10], 4
      %s222 = int_to_ptr.vmem [resolvable:$true] %s221
      %s223 = sshll.u32 %s4, 4
      %s224 = int_to_ptr.hbm [resolvable:$true] %s223
      %226 = dma.vmem_to_hbm [thread:$0]  %s222, 128, %s224, [#allocation4]
    $region37: #{tpu_custom_call.1} parent=1 // pred_fallthru
      _
    // Predicated region
    $region38: #{tpu_custom_call.1} parent=1 // pred_check
      _
    $region39: #{tpu_custom_call.1} parent=1 // pred_check_branch
      %228 = sbr.rel (0) target = $region41
    $region40: #{tpu_custom_call.1} parent=1 // pred_region
      %230 = dma.done [#allocation4], 128
    $region41: #{tpu_custom_call.1} parent=1 // pred_fallthru
      _
    %231 = vsyncpa [#allocation3], 1
    %232 = vsyncpa [#allocation6], 1
    %233 = vsyncpa [#allocation9], 1
    %234 = vsyncpa [#allocation4], 1

</llo_original>
